<compile_context>
chip_gen: v5e
topology: v5e:2x2
jax: 0.10.0
libtpu: 0.0.40
codegen_flags: <defaults>
</compile_context>

<pallas_src>
import functools

import jax
import jax.numpy as jnp
from jax.experimental import pallas as pl
from jax.experimental.pallas import tpu as pltpu

LANES = 128
SUBLANES = 8
GRANULE = 16 * LANES          # 2048 elems = one (16,128) tile (f32 & bf16 safe)
MAX_CHUNK_ROWS = 1024         # in-kernel compute chunk (0.5 MiB at f32)


def _rel_l1_tile_kernel(pred_ref, target_ref, out_ref, *, eps, block_rows,
                        chunk_rows, n_tiles, valid_rows_last):
    """Write this tile's (8,128) partial sum of |p-t|/(|t|+eps) to out_ref."""
    n_chunks = block_rows // chunk_rows

    def tile_partial(masked):
        def chunk_body(j, acc):
            r0 = pl.multiple_of(j * chunk_rows, chunk_rows)
            p = pred_ref[pl.ds(r0, chunk_rows), :].astype(jnp.float32)
            t = target_ref[pl.ds(r0, chunk_rows), :].astype(jnp.float32)
            denom = jnp.abs(t) + jnp.float32(eps)
            # EUP reciprocal + one Newton-Raphson step -> ~f32-exact, cheap VALU.
            inv = pl.reciprocal(denom, approx=True)
            inv = inv * (jnp.float32(2.0) - denom * inv)
            rel = jnp.abs(p - t) * inv
            if masked:
                # Only the genuinely partial last tile pays for the row mask.
                row = r0 + jax.lax.broadcasted_iota(
                    jnp.int32, (chunk_rows, LANES), 0)
                rel = jnp.where(row < valid_rows_last, rel, jnp.float32(0.0))
            # Fold groups of 8 rows onto the (8,128) running sum (VPU adds only;
            # the single cross-lane reduce happens once in the wrapper).
            return acc + rel.reshape(
                chunk_rows // SUBLANES, SUBLANES, LANES).sum(axis=0)

        return jax.lax.fori_loop(0, n_chunks, chunk_body,
                                 jnp.zeros((SUBLANES, LANES), jnp.float32))

    if valid_rows_last == block_rows:      # static: every tile is full
        out_ref[...] = tile_partial(False)
    else:
        i = pl.program_id(0)

        @pl.when(i < n_tiles - 1)
        def _():
            out_ref[...] = tile_partial(False)

        @pl.when(i == n_tiles - 1)
        def _():
            out_ref[...] = tile_partial(True)


def _default_tile_rows():
    kind = ""
    try:
        kind = jax.devices()[0].device_kind.lower()
    except Exception:
        pass
    # v5e: keep blocks at 2 MiB/input (smallest scoped-VMEM budget).
    # v6e/v7x/other: 4 MiB/input blocks amortize the ~0.35us per-step overhead.
    if "v5" in kind and ("lite" in kind or "v5e" in kind):
        return 4096
    return 8192


def relative_l1_loss(pred, target, eps=1e-8, *, tile_rows=None, chunk_rows=None):
    """Mean relative L1 error; the elementwise hot path runs in a Pallas kernel."""
    assert pred.shape == target.shape, "pred/target must have the same shape"

    n_elems = pred.size
    pred_flat = jnp.ravel(pred)        # free reshape of contiguous input, no cast
    target_flat = jnp.ravel(target)

    n_main = (n_elems // GRANULE) * GRANULE
    total = jnp.float32(0.0)

    if n_main:
        rows = n_main // LANES                       # multiple of 16

        if tile_rows is None:
            tile_rows = _default_tile_rows()
        assert tile_rows >= 16 and tile_rows % 16 == 0, \
            "tile_rows must be a positive multiple of 16"

        block_rows = min(tile_rows, rows)
        if chunk_rows is None:
            chunk = min(MAX_CHUNK_ROWS, block_rows)
        else:
            assert chunk_rows >= 16 and chunk_rows % 16 == 0, \
                "chunk_rows must be a positive multiple of 16"
            chunk = min(chunk_rows, block_rows)
        if block_rows % chunk:
            block_rows = (block_rows // chunk) * chunk   # keep chunks exact
        n_tiles = int(pl.cdiv(rows, block_rows))
        valid_rows_last = rows - (n_tiles - 1) * block_rows   # static, > 0

        p2d = pred_flat[:n_main].reshape(rows, LANES)
        t2d = target_flat[:n_main].reshape(rows, LANES)

        in_block_bytes = block_rows * LANES * (p2d.dtype.itemsize
                                               + t2d.dtype.itemsize)
        # Double-buffered inputs + chunk-sized temporaries; cap at 48 MiB so the
        # limit stays inside v7x's 64 MiB physical VMEM (v5e/v6e have 128 MiB).
        vmem_limit = int(min(48 * 1024 * 1024,
                             max(32 * 1024 * 1024,
                                 4 * in_block_bytes + 8 * 1024 * 1024)))

        partials = pl.pallas_call(
            functools.partial(
                _rel_l1_tile_kernel,
                eps=float(eps),
                block_rows=block_rows,
                chunk_rows=chunk,
                n_tiles=n_tiles,
                valid_rows_last=int(valid_rows_last),
            ),
            out_shape=jax.ShapeDtypeStruct((n_tiles * SUBLANES, LANES),
                                           jnp.float32),
            grid_spec=pltpu.PrefetchScalarGridSpec(
                num_scalar_prefetch=0,
                grid=(n_tiles,),
                in_specs=[
                    pl.BlockSpec((block_rows, LANES), lambda i: (i, 0)),
                    pl.BlockSpec((block_rows, LANES), lambda i: (i, 0)),
                ],
                out_specs=pl.BlockSpec((SUBLANES, LANES), lambda i: (i, 0)),
            ),
            compiler_params=pltpu.CompilerParams(
                dimension_semantics=("parallel",),
                vmem_limit_bytes=vmem_limit,
                allow_input_fusion=[True, True],
            ),
        )(p2d, t2d)

        total = total + jnp.sum(partials)

    n_tail = n_elems - n_main
    if n_tail:
        # <2048 leftover elements: negligible, handled in plain JAX (avoids any
        # pad/copy of the big tensors).
        pt = pred_flat[n_main:].astype(jnp.float32)
        tt = target_flat[n_main:].astype(jnp.float32)
        total = total + jnp.sum(jnp.abs(pt - tt) / (jnp.abs(tt) + jnp.float32(eps)))

    return (total / jnp.float32(n_elems)).astype(jnp.float32)


def _ref_loss(p, t, eps=1e-8):
    p32 = p.astype(jnp.float32)
    t32 = t.astype(jnp.float32)
    return jnp.mean(jnp.abs(p32 - t32) / (jnp.abs(t32) + jnp.float32(eps)))


if __name__ == "__main__":
    key = jax.random.PRNGKey(0)
    k1, k2, k3, k4, k5, k6, k7, k8 = jax.random.split(key, 8)

    # Case 1: NCHW conv-style input (module's typical usage), single full tile.
    shape1 = (2, 4, 16, 16)
    pred1 = jax.random.normal(k1, shape1, dtype=jnp.float32)
    target1 = jax.random.normal(k2, shape1, dtype=jnp.float32) + 0.5
    loss1 = jax.block_until_ready(relative_l1_loss(pred1, target1, eps=1e-8))
    ref1 = _ref_loss(pred1, target1)
    assert jnp.allclose(loss1, ref1, rtol=1e-4, atol=1e-5), (loss1, ref1)

    # Case 2: multi-tile grid + multi-chunk inner loop + masked partial last
    # tile (48 rows, 32-row blocks, 16-row chunks).
    shape2 = (3, 2, 32, 32)
    pred2 = jax.random.normal(k3, shape2, dtype=jnp.float32)
    target2 = jax.random.normal(k4, shape2, dtype=jnp.float32) + 0.5
    loss2 = jax.block_until_ready(
        relative_l1_loss(pred2, target2, tile_rows=32, chunk_rows=16))
    ref2 = _ref_loss(pred2, target2)
    assert jnp.allclose(loss2, ref2, rtol=1e-4, atol=1e-5), (loss2, ref2)

    # Case 3: size not a multiple of 2048 (kernel main slab + plain-JAX tail).
    shape3 = (2, 3, 31, 17)
    pred3 = jax.random.normal(k5, shape3, dtype=jnp.float32)
    target3 = jax.random.normal(k6, shape3, dtype=jnp.float32) + 0.5
    loss3 = jax.block_until_ready(relative_l1_loss(pred3, target3))
    ref3 = _ref_loss(pred3, target3)
    assert jnp.allclose(loss3, ref3, rtol=1e-4, atol=1e-5), (loss3, ref3)

    # Case 4: bf16 inputs (in-kernel f32 up-cast path).
    shape4 = (2, 4, 16, 16)
    pred4 = jax.random.normal(k7, shape4, dtype=jnp.bfloat16)
    target4 = (jax.random.normal(k8, shape4, dtype=jnp.float32)
               + 0.5).astype(jnp.bfloat16)
    loss4 = jax.block_until_ready(relative_l1_loss(pred4, target4))
    ref4 = _ref_loss(pred4, target4)
    assert jnp.allclose(loss4, ref4, rtol=1e-4, atol=1e-5), (loss4, ref4)

    print("KERNEL_OK")
</pallas_src>

<mosaic_0001>
module attributes {stable_mosaic.version = 11 : i64} {
  func.func @_rel_l1_tile_kernel(%arg0: i32, %arg1: memref<16x128xf32, #tpu.memory_space<vmem>>, %arg2: memref<16x128xf32, #tpu.memory_space<vmem>>, %arg3: memref<8x128xf32, #tpu.memory_space<vmem>>) attributes {dimension_semantics = [#tpu.dimension_semantics<parallel>], iteration_bounds = array<i64: 1>, scalar_prefetch = 0 : i64, scratch_operands = 0 : i64, tpu.core_type = #tpu.core_type<tc>, window_params = [{transform_indices = @transform_0, window_bounds = array<i64: 16, 128>}, {transform_indices = @transform_1, window_bounds = array<i64: 16, 128>}, {transform_indices = @transform_2, window_bounds = array<i64: 8, 128>}]} {
    %cst = arith.constant 0.000000e+00 : f32
    %0 = vector.broadcast %cst : f32 to vector<8x128xf32>
    %c0_i32 = arith.constant 0 : i32
    %c16_i32 = arith.constant 16 : i32
    %1 = arith.muli %c0_i32, %c16_i32 : i32
    %2 = tpu.assume_multiple %1, 16 : i32
    %3 = arith.index_cast %2 : i32 to index
    %c0 = arith.constant 0 : index
    %4 = vector.load %arg1[%3, %c0] : memref<16x128xf32, #tpu.memory_space<vmem>>, vector<16x128xf32>
    %5 = arith.index_cast %2 : i32 to index
    %c0_0 = arith.constant 0 : index
    %6 = vector.load %arg2[%5, %c0_0] : memref<16x128xf32, #tpu.memory_space<vmem>>, vector<16x128xf32>
    %7 = math.absf %6 : vector<16x128xf32>
    %cst_1 = arith.constant 9.99999993E-9 : f32
    %8 = vector.broadcast %cst_1 : f32 to vector<16x128xf32>
    %9 = arith.addf %7, %8 : vector<16x128xf32>
    %10 = tpu.reciprocal %9 {approx = true} : vector<16x128xf32> -> vector<16x128xf32>
    %11 = arith.mulf %9, %10 : vector<16x128xf32>
    %cst_2 = arith.constant 2.000000e+00 : f32
    %12 = vector.broadcast %cst_2 : f32 to vector<16x128xf32>
    %13 = arith.subf %12, %11 : vector<16x128xf32>
    %14 = arith.mulf %10, %13 : vector<16x128xf32>
    %15 = arith.subf %4, %6 : vector<16x128xf32>
    %16 = math.absf %15 : vector<16x128xf32>
    %17 = arith.mulf %16, %14 : vector<16x128xf32>
    %18 = vector.shape_cast %17 : vector<16x128xf32> to vector<2x8x128xf32>
    %cst_3 = arith.constant dense<0.000000e+00> : vector<8x128xf32>
    %19 = vector.multi_reduction <add>, %18, %cst_3 [0] : vector<2x8x128xf32> to vector<8x128xf32>
    %20 = arith.addf %0, %19 : vector<8x128xf32>
    %c1_i32 = arith.constant 1 : i32
    %c0_4 = arith.constant 0 : index
    %c0_5 = arith.constant 0 : index
    %21 = vector.load %arg3[%c0_4, %c0_5] : memref<8x128xf32, #tpu.memory_space<vmem>>, vector<8x128xf32>
    tpu.vector_store %arg3[%c0_4, %c0_5], %20 {strides = array<i32>} : memref<8x128xf32, #tpu.memory_space<vmem>>, vector<8x128xf32>,
    return
  }
  func.func @transform_0(%arg0: i32) -> (i32, i32) {
    %c0_i32 = arith.constant 0 : i32
    %c0_i32_0 = arith.constant 0 : i32
    return %arg0, %c0_i32 : i32, i32
  }
  func.func @transform_1(%arg0: i32) -> (i32, i32) {
    %c0_i32 = arith.constant 0 : i32
    %c0_i32_0 = arith.constant 0 : i32
    return %arg0, %c0_i32 : i32, i32
  }
  func.func @transform_2(%arg0: i32) -> (i32, i32) {
    %c0_i32 = arith.constant 0 : i32
    %c0_i32_0 = arith.constant 0 : i32
    return %arg0, %c0_i32 : i32, i32
  }
}

</mosaic_0001>

<llo_original>
// kernel: tpu_custom_call.1
$region0: #{tpu_custom_call.1}
  #allocation0 [shape = 'u32[]', space=smem, size = 0x4, offset = 0x4, fixed_abs, tag = 'smem constant byte address 0x4 - core index']
  #allocation1 [shape = 'u32[72,128]{1,0:T(1,128)}', space=vmem, size = 0x9000, scoped, tag = 'internal scratch']
  %s0 = inlined_call_operand.hbm [shape: f32[16,128], index: 0, kind: input, shape index: {}]
  %s1 = inlined_call_operand.hbm [shape: f32[16,128], index: 1, kind: input, shape index: {}]
  %s2 = inlined_call_operand.hbm [shape: f32[8,128], index: 2, kind: output, shape index: {}]
  %s3 = sld [smem:[#allocation0]]
  $region26: #{tpu_custom_call.1} parent=0
    _
  %s5 = ssub.s32 1, %s3
  %s6 = scalar_select 0, %s5, %s3
  $region1: #{tpu_custom_call.1} parent=0
    #allocation2 [shape = 'u8[8192]{0}', space=vmem, size = 0x2000, scoped, tag = 'input window, operand 0, single buffered']
    #allocation3 [shape = 's32[1]{0}', space=sflag, size = 0x4, scoped, tag = 'scoped memory for tpu_custom_call.1']
    #allocation4 [shape = 's32[1]{0}', space=sflag, size = 0x4, scoped, tag = 'scoped memory for tpu_custom_call.1']
    #allocation5 [shape = 'u8[8192]{0}', space=vmem, size = 0x2000, scoped, tag = 'input window, operand 1, single buffered']
    #allocation6 [shape = 's32[1]{0}', space=sflag, size = 0x4, scoped, tag = 'scoped memory for tpu_custom_call.1']
    #allocation7 [shape = 'u8[4096]{0}', space=vmem, size = 0x1000, scoped, tag = 'output window, operand 0, single buffered']
    %7 = vsyncpa [#allocation3], 0
    %8 = vsyncpa [#allocation6], 0
    %9 = vsyncpa [#allocation4], 0
    // Predicated region
    $region2: #{tpu_custom_call.1} parent=1 // pred_check
      _
    $region3: #{tpu_custom_call.1} parent=1 // pred_check_branch
      %11 = sbr.rel (0) target = $region5
    $region4: #{tpu_custom_call.1} parent=1 // pred_region
      %13 = vsyncadd [#allocation3], 0
      %s14 = sshll.u32 %s0, 4
      %s15 = int_to_ptr.hbm [resolvable:$true] %s14
      %s16 = sshll.u32 [#allocation2], 4
      %s17 = int_to_ptr.vmem [resolvable:$true] %s16
      %22 = dma.hbm_to_vmem [thread:$0]  %s15, 256, %s17, [#allocation3], 128, 128, 8
    $region5: #{tpu_custom_call.1} parent=1 // pred_fallthru
      _
    // Predicated region
    $region6: #{tpu_custom_call.1} parent=1 // pred_check
      _
    $region7: #{tpu_custom_call.1} parent=1 // pred_check_branch
      %24 = sbr.rel (0) target = $region9
    $region8: #{tpu_custom_call.1} parent=1 // pred_region
      %26 = vsyncadd [#allocation6], 0
      %s27 = sshll.u32 %s1, 4
      %s28 = int_to_ptr.hbm [resolvable:$true] %s27
      %s29 = sshll.u32 [#allocation5], 4
      %s30 = int_to_ptr.vmem [resolvable:$true] %s29
      %35 = dma.hbm_to_vmem [thread:$0]  %s28, 256, %s30, [#allocation6], 128, 128, 8
    $region9: #{tpu_custom_call.1} parent=1 // pred_fallthru
      _
    // Predicated region
    $region10: #{tpu_custom_call.1} parent=1 // pred_check
      _
    $region11: #{tpu_custom_call.1} parent=1 // pred_check_branch
      %37 = sbr.rel (0) target = $region13
    $region12: #{tpu_custom_call.1} parent=1 // pred_region
      %39 = dma.done [#allocation3], 256
    $region13: #{tpu_custom_call.1} parent=1 // pred_fallthru
      _
    // Predicated region
    $region14: #{tpu_custom_call.1} parent=1 // pred_check
      _
    $region15: #{tpu_custom_call.1} parent=1 // pred_check_branch
      %41 = sbr.rel (0) target = $region17
    $region16: #{tpu_custom_call.1} parent=1 // pred_region
      %43 = dma.done [#allocation6], 256
    $region17: #{tpu_custom_call.1} parent=1 // pred_fallthru
      _
    %v44 = vld [vmem:[#allocation2] sm:$0xff]
    %v45 = vld [vmem:[#allocation2 + $0x8] sm:$0xff]
    %v46 = vld [vmem:[#allocation5] sm:$0xff]
    %v47 = vld [vmem:[#allocation5 + $0x8] sm:$0xff]
    %v48 = vand.u32 2147483647, %v46
    %v49 = vand.u32 2147483647, %v47
    %v50 = vadd.f32 %v48, 1e-08
    %v51 = vadd.f32 %v49, 1e-08
    %v52 = vrcp.pop %v50
    %v53 = vrcp.pop %v51
    %v54 = vmul.f32 %v50, %v52
    %v55 = vmul.f32 %v51, %v53
    %v56 = vsub.f32 2.0, %v54
    %v57 = vsub.f32 2.0, %v55
    %v58 = vmul.f32 %v52, %v56
    %v59 = vmul.f32 %v53, %v57
    %v60 = vsub.f32 %v44, %v46
    %v61 = vsub.f32 %v45, %v47
    %v62 = vand.u32 2147483647, %v60
    %v63 = vand.u32 2147483647, %v61
    %v64 = vmul.f32 %v62, %v58
    %v65 = vmul.f32 %v63, %v59
    %v66 = vadd.f32 %v64, %v65
    %v67 = vadd.f32 %v66, 0.0
    %68 = vst [vmem:[#allocation7] sm:$0xff] %v67
    // Predicated region
    $region18: #{tpu_custom_call.1} parent=1 // pred_check
      _
    $region19: #{tpu_custom_call.1} parent=1 // pred_check_branch
      %70 = sbr.rel (0) target = $region21
    $region20: #{tpu_custom_call.1} parent=1 // pred_region
      %72 = vsyncadd [#allocation4], 0
      %s74 = sshll.u32 [#allocation7], 4
      %s75 = int_to_ptr.vmem [resolvable:$true] %s74
      %s76 = sshll.u32 %s2, 4
      %s77 = int_to_ptr.hbm [resolvable:$true] %s76
      %79 = dma.vmem_to_hbm [thread:$0]  %s75, 128, %s77, [#allocation4]
    $region21: #{tpu_custom_call.1} parent=1 // pred_fallthru
      _
    // Predicated region
    $region22: #{tpu_custom_call.1} parent=1 // pred_check
      _
    $region23: #{tpu_custom_call.1} parent=1 // pred_check_branch
      %81 = sbr.rel (0) target = $region25
    $region24: #{tpu_custom_call.1} parent=1 // pred_region
      %83 = dma.done [#allocation4], 128
    $region25: #{tpu_custom_call.1} parent=1 // pred_fallthru
      _
    %84 = vsyncpa [#allocation3], 1
    %85 = vsyncpa [#allocation6], 1
    %86 = vsyncpa [#allocation4], 1

</llo_original>
